<compile_context>
chip_gen: v6e
topology: v6e:2x2x1
jax: 0.10.0
libtpu: 0.0.40
codegen_flags: <defaults>
</compile_context>

<pallas_src>
import functools
import math

import jax
import jax.numpy as jnp
from jax import lax
from jax.experimental import pallas as pl
from jax.experimental.pallas import tpu as pltpu


def _round_up(x, m):
    return (x + m - 1) // m * m


def _mlp_stack_kernel(*refs, out_dims, use_relu, eps):
    """Fused (Linear -> act -> LayerNorm) x n_layers on one batch tile.

    refs = (x_ref, [w, b, gamma, beta] * n_layers, o_ref)
    out_dims[l] = real (unpadded) output feature count of layer l.
    """
    x_ref = refs[0]
    o_ref = refs[-1]
    p_refs = refs[1:-1]

    h = x_ref[...]                                   # (TB, d0_pad), f32
    for li, d_out in enumerate(out_dims):
        w_ref, b_ref, g_ref, be_ref = p_refs[4 * li: 4 * li + 4]

        # Linear on the MXU, f32 accumulation.
        y = jnp.dot(h, w_ref[...], preferred_element_type=jnp.float32) + b_ref[...]

        # Activation.
        a = jnp.maximum(y, 0.0) if use_relu else jnp.tanh(y)

        # One-pass LayerNorm stats over the REAL feature count (padded cols are 0).
        inv_n = 1.0 / float(d_out)
        s = jnp.sum(a, axis=-1, keepdims=True)
        ss = jnp.sum(a * a, axis=-1, keepdims=True)
        mean = s * inv_n
        var = jnp.maximum(ss * inv_n - mean * mean, 0.0)
        inv = lax.rsqrt(var + eps)

        # gamma/beta are zero in padded columns -> padded outputs stay exactly 0.
        h = (a - mean) * inv * g_ref[...] + be_ref[...]

    o_ref[...] = h.astype(o_ref.dtype)


def mlp_layer_forward(x, params, *, use_relu=True, eps=1e-5, tile_b=256, lane=128):
    """Fused MLPLayer forward. x: [B, input_dim] -> [B, output_dim].

    params: list of (w[in,out], b[out], gamma[out], beta[out]) per layer.
    lane: feature padding multiple (128; use 256 to fully fill v6e/v7x MXUs
          at large hidden dims).
    """
    B, d_in = x.shape

    # ---- pad feature dims to lane multiples (zeros), collect real out dims ----
    d0_pad = _round_up(d_in, lane)
    padded_params = []
    out_dims = []
    in_pad = d0_pad
    for (w, b, g, be) in params:
        di, do = w.shape
        do_pad = _round_up(do, lane)
        w_p = jnp.zeros((in_pad, do_pad), jnp.float32).at[:di, :do].set(w)
        b_p = jnp.zeros((1, do_pad), jnp.float32).at[:, :do].set(b)
        g_p = jnp.zeros((1, do_pad), jnp.float32).at[:, :do].set(g)
        be_p = jnp.zeros((1, do_pad), jnp.float32).at[:, :do].set(be)
        padded_params.append((w_p, b_p, g_p, be_p))
        out_dims.append(do)
        in_pad = do_pad
    d_last = out_dims[-1]
    d_last_pad = _round_up(d_last, lane)

    # ---- batch tiling: large tile, ragged batch handled by zero-padding ----
    tile = _round_up(min(tile_b, _round_up(B, 8)), 8)
    B_pad = _round_up(B, tile)
    x_p = jnp.zeros((B_pad, d0_pad), jnp.float32).at[:B, :d_in].set(x)
    grid = (B_pad // tile,)
    # NOTE: on v7x (2 TCs/chip) prefer tile_b such that grid has >= 2 'parallel'
    # steps for large batches; for tiny batches a 1-step grid is fine.

    in_specs = [pl.BlockSpec((tile, d0_pad), lambda i: (i, 0))]
    flat_params = []
    for (w_p, b_p, g_p, be_p) in padded_params:
        in_specs.append(pl.BlockSpec(w_p.shape, lambda i: (0, 0)))
        in_specs.append(pl.BlockSpec(b_p.shape, lambda i: (0, 0)))
        in_specs.append(pl.BlockSpec(g_p.shape, lambda i: (0, 0)))
        in_specs.append(pl.BlockSpec(be_p.shape, lambda i: (0, 0)))
        flat_params += [w_p, b_p, g_p, be_p]
    out_specs = pl.BlockSpec((tile, d_last_pad), lambda i: (i, 0))

    # ---- explicit VMEM budget (resident params + double-buffered tiles) ----
    max_pad = max([d0_pad] + [w_p.shape[1] for (w_p, _, _, _) in padded_params])
    param_bytes = sum(int(p.size) * p.dtype.itemsize for p in flat_params)
    tile_bytes = tile * max_pad * 4
    vmem_bytes = 2 * param_bytes + 8 * tile_bytes + (4 << 20)
    vmem_limit = int(min(max(vmem_bytes, 16 << 20), 48 << 20))
    # TODO(synk): for very large hidden dims, tile the weight along K with an
    # 'arbitrary' grid axis (acc scratch + pl.when finalize) instead of keeping
    # the full double-buffered weight resident.

    kernel = functools.partial(_mlp_stack_kernel, out_dims=tuple(out_dims),
                               use_relu=use_relu, eps=eps)

    out_pad = pl.pallas_call(
        kernel,
        out_shape=jax.ShapeDtypeStruct((B_pad, d_last_pad), jnp.float32),
        grid_spec=pltpu.PrefetchScalarGridSpec(
            num_scalar_prefetch=0,
            grid=grid,
            in_specs=in_specs,
            out_specs=out_specs,
        ),
        compiler_params=pltpu.CompilerParams(
            dimension_semantics=("parallel",),
            vmem_limit_bytes=vmem_limit,
        ),
    )(x_p, *flat_params)

    return out_pad[:B, :d_last]


# ---------------- parameter construction (deterministic, in-script) ----------------

def _xavier_uniform(key, fan_in, fan_out, gain):
    limit = gain * math.sqrt(6.0 / (fan_in + fan_out))
    return jax.random.uniform(key, (fan_in, fan_out), jnp.float32, -limit, limit)


def init_mlp_params(key, input_dim, output_dim, hidden_dim, layer_N, use_relu=True):
    gain = math.sqrt(2.0) if use_relu else 5.0 / 3.0  # calculate_gain('relu'/'tanh')
    dims = [(input_dim, hidden_dim)]
    dims += [(hidden_dim, hidden_dim)] * (layer_N - 1)
    dims += [(hidden_dim, output_dim)]

    params = []
    for (d_in, d_out) in dims:
        key, sub = jax.random.split(key)
        w = _xavier_uniform(sub, d_in, d_out, gain)   # stored [in, out]
        b = jnp.zeros((d_out,), jnp.float32)          # Linear bias = 0
        g = jnp.ones((d_out,), jnp.float32)           # LayerNorm weight
        be = jnp.zeros((d_out,), jnp.float32)         # LayerNorm bias
        params.append((w, b, g, be))
    return params


# ---------------- pure-JAX reference (for correctness check only) ----------------

def mlp_reference(x, params, *, use_relu=True, eps=1e-5):
    h = x
    for (w, b, g, be) in params:
        y = h @ w + b
        a = jnp.maximum(y, 0.0) if use_relu else jnp.tanh(y)
        mean = jnp.mean(a, axis=-1, keepdims=True)
        var = jnp.mean((a - mean) ** 2, axis=-1, keepdims=True)
        h = (a - mean) / jnp.sqrt(var + eps) * g + be
    return h


if __name__ == "__main__":
    # Module hyperparameters (small, consistent with the forward pass)
    input_dim, output_dim, hidden_dim = 24, 16, 32
    layer_N = 2
    use_ReLU = True
    batch = 16

    key = jax.random.PRNGKey(0)
    key, pkey, xkey = jax.random.split(key, 3)

    params = init_mlp_params(pkey, input_dim, output_dim, hidden_dim, layer_N,
                             use_relu=use_ReLU)
    x = jax.random.normal(xkey, (batch, input_dim), jnp.float32)

    out = mlp_layer_forward(x, params, use_relu=use_ReLU)
    out = jax.block_until_ready(out)
    assert out.shape == (batch, output_dim)

    ref = jax.block_until_ready(mlp_reference(x, params, use_relu=use_ReLU))
    assert jnp.allclose(out, ref, atol=1e-4, rtol=1e-4), "mismatch vs reference"

    print("KERNEL_OK")
</pallas_src>

<mosaic_0001>
module attributes {stable_mosaic.version = 11 : i64} {
  func.func @_mlp_stack_kernel(%arg0: i32, %arg1: memref<16x128xf32, #tpu.memory_space<vmem>>, %arg2: memref<128x128xf32, #tpu.memory_space<vmem>>, %arg3: memref<1x128xf32, #tpu.memory_space<vmem>>, %arg4: memref<1x128xf32, #tpu.memory_space<vmem>>, %arg5: memref<1x128xf32, #tpu.memory_space<vmem>>, %arg6: memref<128x128xf32, #tpu.memory_space<vmem>>, %arg7: memref<1x128xf32, #tpu.memory_space<vmem>>, %arg8: memref<1x128xf32, #tpu.memory_space<vmem>>, %arg9: memref<1x128xf32, #tpu.memory_space<vmem>>, %arg10: memref<128x128xf32, #tpu.memory_space<vmem>>, %arg11: memref<1x128xf32, #tpu.memory_space<vmem>>, %arg12: memref<1x128xf32, #tpu.memory_space<vmem>>, %arg13: memref<1x128xf32, #tpu.memory_space<vmem>>, %arg14: memref<16x128xf32, #tpu.memory_space<vmem>>) attributes {dimension_semantics = [#tpu.dimension_semantics<parallel>], iteration_bounds = array<i64: 1>, scalar_prefetch = 0 : i64, scratch_operands = 0 : i64, tpu.core_type = #tpu.core_type<tc>, window_params = [{transform_indices = @transform_0, window_bounds = array<i64: 16, 128>}, {pipeline_mode = #tpu.pipeline_mode<synchronous>, transform_indices = @transform_1, window_bounds = array<i64: 128, 128>}, {pipeline_mode = #tpu.pipeline_mode<synchronous>, transform_indices = @transform_2, window_bounds = array<i64: 1, 128>}, {pipeline_mode = #tpu.pipeline_mode<synchronous>, transform_indices = @transform_3, window_bounds = array<i64: 1, 128>}, {pipeline_mode = #tpu.pipeline_mode<synchronous>, transform_indices = @transform_4, window_bounds = array<i64: 1, 128>}, {pipeline_mode = #tpu.pipeline_mode<synchronous>, transform_indices = @transform_5, window_bounds = array<i64: 128, 128>}, {pipeline_mode = #tpu.pipeline_mode<synchronous>, transform_indices = @transform_6, window_bounds = array<i64: 1, 128>}, {pipeline_mode = #tpu.pipeline_mode<synchronous>, transform_indices = @transform_7, window_bounds = array<i64: 1, 128>}, {pipeline_mode = #tpu.pipeline_mode<synchronous>, transform_indices = @transform_8, window_bounds = array<i64: 1, 128>}, {pipeline_mode = #tpu.pipeline_mode<synchronous>, transform_indices = @transform_9, window_bounds = array<i64: 128, 128>}, {pipeline_mode = #tpu.pipeline_mode<synchronous>, transform_indices = @transform_10, window_bounds = array<i64: 1, 128>}, {pipeline_mode = #tpu.pipeline_mode<synchronous>, transform_indices = @transform_11, window_bounds = array<i64: 1, 128>}, {pipeline_mode = #tpu.pipeline_mode<synchronous>, transform_indices = @transform_12, window_bounds = array<i64: 1, 128>}, {transform_indices = @transform_13, window_bounds = array<i64: 16, 128>}]} {
    %c0 = arith.constant 0 : index
    %c0_0 = arith.constant 0 : index
    %0 = vector.load %arg1[%c0, %c0_0] : memref<16x128xf32, #tpu.memory_space<vmem>>, vector<16x128xf32>
    %c0_1 = arith.constant 0 : index
    %c0_2 = arith.constant 0 : index
    %1 = vector.load %arg2[%c0_1, %c0_2] : memref<128x128xf32, #tpu.memory_space<vmem>>, vector<128x128xf32>
    %cst = arith.constant dense<0.000000e+00> : vector<16x128xf32>
    %2 = tpu.matmul %0, %1, %cst {dimension_numbers = #tpu.dot_dimension_numbers<[1], [0], [0], [1], [0, 0, 1, 1], [], []>} : vector<16x128xf32>, vector<128x128xf32>, vector<16x128xf32> -> vector<16x128xf32>
    %c0_3 = arith.constant 0 : index
    %c0_4 = arith.constant 0 : index
    %3 = vector.load %arg3[%c0_3, %c0_4] : memref<1x128xf32, #tpu.memory_space<vmem>>, vector<1x128xf32>
    %4 = vector.broadcast %3 : vector<1x128xf32> to vector<16x128xf32>
    %5 = arith.addf %2, %4 : vector<16x128xf32>
    %cst_5 = arith.constant 0.000000e+00 : f32
    %6 = vector.broadcast %cst_5 : f32 to vector<16x128xf32>
    %7 = arith.maximumf %5, %6 : vector<16x128xf32>
    %cst_6 = arith.constant dense<0.000000e+00> : vector<16xf32>
    %8 = vector.multi_reduction <add>, %7, %cst_6 [1] : vector<16x128xf32> to vector<16xf32>
    %9 = vector.shape_cast %8 : vector<16xf32> to vector<16x1xf32>
    %10 = arith.mulf %7, %7 : vector<16x128xf32>
    %cst_7 = arith.constant dense<0.000000e+00> : vector<16xf32>
    %11 = vector.multi_reduction <add>, %10, %cst_7 [1] : vector<16x128xf32> to vector<16xf32>
    %12 = vector.shape_cast %11 : vector<16xf32> to vector<16x1xf32>
    %cst_8 = arith.constant 3.125000e-02 : f32
    %13 = vector.broadcast %cst_8 : f32 to vector<16x1xf32>
    %14 = arith.mulf %9, %13 : vector<16x1xf32>
    %cst_9 = arith.constant 3.125000e-02 : f32
    %15 = vector.broadcast %cst_9 : f32 to vector<16x1xf32>
    %16 = arith.mulf %12, %15 : vector<16x1xf32>
    %17 = arith.mulf %14, %14 : vector<16x1xf32>
    %18 = arith.subf %16, %17 : vector<16x1xf32>
    %cst_10 = arith.constant 0.000000e+00 : f32
    %19 = vector.broadcast %cst_10 : f32 to vector<16x1xf32>
    %20 = arith.maximumf %18, %19 : vector<16x1xf32>
    %cst_11 = arith.constant 9.99999974E-6 : f32
    %21 = vector.broadcast %cst_11 : f32 to vector<16x1xf32>
    %22 = arith.addf %20, %21 : vector<16x1xf32>
    %23 = math.rsqrt %22 : vector<16x1xf32>
    %24 = vector.broadcast %14 : vector<16x1xf32> to vector<16x128xf32>
    %25 = arith.subf %7, %24 : vector<16x128xf32>
    %26 = vector.broadcast %23 : vector<16x1xf32> to vector<16x128xf32>
    %27 = arith.mulf %25, %26 : vector<16x128xf32>
    %c0_12 = arith.constant 0 : index
    %c0_13 = arith.constant 0 : index
    %28 = vector.load %arg4[%c0_12, %c0_13] : memref<1x128xf32, #tpu.memory_space<vmem>>, vector<1x128xf32>
    %29 = vector.broadcast %28 : vector<1x128xf32> to vector<16x128xf32>
    %30 = arith.mulf %27, %29 : vector<16x128xf32>
    %c0_14 = arith.constant 0 : index
    %c0_15 = arith.constant 0 : index
    %31 = vector.load %arg5[%c0_14, %c0_15] : memref<1x128xf32, #tpu.memory_space<vmem>>, vector<1x128xf32>
    %32 = vector.broadcast %31 : vector<1x128xf32> to vector<16x128xf32>
    %33 = arith.addf %30, %32 : vector<16x128xf32>
    %c0_16 = arith.constant 0 : index
    %c0_17 = arith.constant 0 : index
    %34 = vector.load %arg6[%c0_16, %c0_17] : memref<128x128xf32, #tpu.memory_space<vmem>>, vector<128x128xf32>
    %cst_18 = arith.constant dense<0.000000e+00> : vector<16x128xf32>
    %35 = tpu.matmul %33, %34, %cst_18 {dimension_numbers = #tpu.dot_dimension_numbers<[1], [0], [0], [1], [0, 0, 1, 1], [], []>} : vector<16x128xf32>, vector<128x128xf32>, vector<16x128xf32> -> vector<16x128xf32>
    %c0_19 = arith.constant 0 : index
    %c0_20 = arith.constant 0 : index
    %36 = vector.load %arg7[%c0_19, %c0_20] : memref<1x128xf32, #tpu.memory_space<vmem>>, vector<1x128xf32>
    %37 = vector.broadcast %36 : vector<1x128xf32> to vector<16x128xf32>
    %38 = arith.addf %35, %37 : vector<16x128xf32>
    %cst_21 = arith.constant 0.000000e+00 : f32
    %39 = vector.broadcast %cst_21 : f32 to vector<16x128xf32>
    %40 = arith.maximumf %38, %39 : vector<16x128xf32>
    %cst_22 = arith.constant dense<0.000000e+00> : vector<16xf32>
    %41 = vector.multi_reduction <add>, %40, %cst_22 [1] : vector<16x128xf32> to vector<16xf32>
    %42 = vector.shape_cast %41 : vector<16xf32> to vector<16x1xf32>
    %43 = arith.mulf %40, %40 : vector<16x128xf32>
    %cst_23 = arith.constant dense<0.000000e+00> : vector<16xf32>
    %44 = vector.multi_reduction <add>, %43, %cst_23 [1] : vector<16x128xf32> to vector<16xf32>
    %45 = vector.shape_cast %44 : vector<16xf32> to vector<16x1xf32>
    %cst_24 = arith.constant 3.125000e-02 : f32
    %46 = vector.broadcast %cst_24 : f32 to vector<16x1xf32>
    %47 = arith.mulf %42, %46 : vector<16x1xf32>
    %cst_25 = arith.constant 3.125000e-02 : f32
    %48 = vector.broadcast %cst_25 : f32 to vector<16x1xf32>
    %49 = arith.mulf %45, %48 : vector<16x1xf32>
    %50 = arith.mulf %47, %47 : vector<16x1xf32>
    %51 = arith.subf %49, %50 : vector<16x1xf32>
    %cst_26 = arith.constant 0.000000e+00 : f32
    %52 = vector.broadcast %cst_26 : f32 to vector<16x1xf32>
    %53 = arith.maximumf %51, %52 : vector<16x1xf32>
    %cst_27 = arith.constant 9.99999974E-6 : f32
    %54 = vector.broadcast %cst_27 : f32 to vector<16x1xf32>
    %55 = arith.addf %53, %54 : vector<16x1xf32>
    %56 = math.rsqrt %55 : vector<16x1xf32>
    %57 = vector.broadcast %47 : vector<16x1xf32> to vector<16x128xf32>
    %58 = arith.subf %40, %57 : vector<16x128xf32>
    %59 = vector.broadcast %56 : vector<16x1xf32> to vector<16x128xf32>
    %60 = arith.mulf %58, %59 : vector<16x128xf32>
    %c0_28 = arith.constant 0 : index
    %c0_29 = arith.constant 0 : index
    %61 = vector.load %arg8[%c0_28, %c0_29] : memref<1x128xf32, #tpu.memory_space<vmem>>, vector<1x128xf32>
    %62 = vector.broadcast %61 : vector<1x128xf32> to vector<16x128xf32>
    %63 = arith.mulf %60, %62 : vector<16x128xf32>
    %c0_30 = arith.constant 0 : index
    %c0_31 = arith.constant 0 : index
    %64 = vector.load %arg9[%c0_30, %c0_31] : memref<1x128xf32, #tpu.memory_space<vmem>>, vector<1x128xf32>
    %65 = vector.broadcast %64 : vector<1x128xf32> to vector<16x128xf32>
    %66 = arith.addf %63, %65 : vector<16x128xf32>
    %c0_32 = arith.constant 0 : index
    %c0_33 = arith.constant 0 : index
    %67 = vector.load %arg10[%c0_32, %c0_33] : memref<128x128xf32, #tpu.memory_space<vmem>>, vector<128x128xf32>
    %cst_34 = arith.constant dense<0.000000e+00> : vector<16x128xf32>
    %68 = tpu.matmul %66, %67, %cst_34 {dimension_numbers = #tpu.dot_dimension_numbers<[1], [0], [0], [1], [0, 0, 1, 1], [], []>} : vector<16x128xf32>, vector<128x128xf32>, vector<16x128xf32> -> vector<16x128xf32>
    %c0_35 = arith.constant 0 : index
    %c0_36 = arith.constant 0 : index
    %69 = vector.load %arg11[%c0_35, %c0_36] : memref<1x128xf32, #tpu.memory_space<vmem>>, vector<1x128xf32>
    %70 = vector.broadcast %69 : vector<1x128xf32> to vector<16x128xf32>
    %71 = arith.addf %68, %70 : vector<16x128xf32>
    %cst_37 = arith.constant 0.000000e+00 : f32
    %72 = vector.broadcast %cst_37 : f32 to vector<16x128xf32>
    %73 = arith.maximumf %71, %72 : vector<16x128xf32>
    %cst_38 = arith.constant dense<0.000000e+00> : vector<16xf32>
    %74 = vector.multi_reduction <add>, %73, %cst_38 [1] : vector<16x128xf32> to vector<16xf32>
    %75 = vector.shape_cast %74 : vector<16xf32> to vector<16x1xf32>
    %76 = arith.mulf %73, %73 : vector<16x128xf32>
    %cst_39 = arith.constant dense<0.000000e+00> : vector<16xf32>
    %77 = vector.multi_reduction <add>, %76, %cst_39 [1] : vector<16x128xf32> to vector<16xf32>
    %78 = vector.shape_cast %77 : vector<16xf32> to vector<16x1xf32>
    %cst_40 = arith.constant 6.250000e-02 : f32
    %79 = vector.broadcast %cst_40 : f32 to vector<16x1xf32>
    %80 = arith.mulf %75, %79 : vector<16x1xf32>
    %cst_41 = arith.constant 6.250000e-02 : f32
    %81 = vector.broadcast %cst_41 : f32 to vector<16x1xf32>
    %82 = arith.mulf %78, %81 : vector<16x1xf32>
    %83 = arith.mulf %80, %80 : vector<16x1xf32>
    %84 = arith.subf %82, %83 : vector<16x1xf32>
    %cst_42 = arith.constant 0.000000e+00 : f32
    %85 = vector.broadcast %cst_42 : f32 to vector<16x1xf32>
    %86 = arith.maximumf %84, %85 : vector<16x1xf32>
    %cst_43 = arith.constant 9.99999974E-6 : f32
    %87 = vector.broadcast %cst_43 : f32 to vector<16x1xf32>
    %88 = arith.addf %86, %87 : vector<16x1xf32>
    %89 = math.rsqrt %88 : vector<16x1xf32>
    %90 = vector.broadcast %80 : vector<16x1xf32> to vector<16x128xf32>
    %91 = arith.subf %73, %90 : vector<16x128xf32>
    %92 = vector.broadcast %89 : vector<16x1xf32> to vector<16x128xf32>
    %93 = arith.mulf %91, %92 : vector<16x128xf32>
    %c0_44 = arith.constant 0 : index
    %c0_45 = arith.constant 0 : index
    %94 = vector.load %arg12[%c0_44, %c0_45] : memref<1x128xf32, #tpu.memory_space<vmem>>, vector<1x128xf32>
    %95 = vector.broadcast %94 : vector<1x128xf32> to vector<16x128xf32>
    %96 = arith.mulf %93, %95 : vector<16x128xf32>
    %c0_46 = arith.constant 0 : index
    %c0_47 = arith.constant 0 : index
    %97 = vector.load %arg13[%c0_46, %c0_47] : memref<1x128xf32, #tpu.memory_space<vmem>>, vector<1x128xf32>
    %98 = vector.broadcast %97 : vector<1x128xf32> to vector<16x128xf32>
    %99 = arith.addf %96, %98 : vector<16x128xf32>
    %c0_48 = arith.constant 0 : index
    %c0_49 = arith.constant 0 : index
    %100 = vector.load %arg14[%c0_48, %c0_49] : memref<16x128xf32, #tpu.memory_space<vmem>>, vector<16x128xf32>
    tpu.vector_store %arg14[%c0_48, %c0_49], %99 {strides = array<i32>} : memref<16x128xf32, #tpu.memory_space<vmem>>, vector<16x128xf32>,
    return
  }
  func.func @transform_0(%arg0: i32) -> (i32, i32) {
    %c0_i32 = arith.constant 0 : i32
    %c0_i32_0 = arith.constant 0 : i32
    return %arg0, %c0_i32 : i32, i32
  }
  func.func @transform_1(%arg0: i32) -> (i32, i32) {
    %c0_i32 = arith.constant 0 : i32
    %c0_i32_0 = arith.constant 0 : i32
    %c0_i32_1 = arith.constant 0 : i32
    return %c0_i32, %c0_i32_0 : i32, i32
  }
  func.func @transform_2(%arg0: i32) -> (i32, i32) {
    %c0_i32 = arith.constant 0 : i32
    %c0_i32_0 = arith.constant 0 : i32
    %c0_i32_1 = arith.constant 0 : i32
    return %c0_i32, %c0_i32_0 : i32, i32
  }
  func.func @transform_3(%arg0: i32) -> (i32, i32) {
    %c0_i32 = arith.constant 0 : i32
    %c0_i32_0 = arith.constant 0 : i32
    %c0_i32_1 = arith.constant 0 : i32
    return %c0_i32, %c0_i32_0 : i32, i32
  }
  func.func @transform_4(%arg0: i32) -> (i32, i32) {
    %c0_i32 = arith.constant 0 : i32
    %c0_i32_0 = arith.constant 0 : i32
    %c0_i32_1 = arith.constant 0 : i32
    return %c0_i32, %c0_i32_0 : i32, i32
  }
  func.func @transform_5(%arg0: i32) -> (i32, i32) {
    %c0_i32 = arith.constant 0 : i32
    %c0_i32_0 = arith.constant 0 : i32
    %c0_i32_1 = arith.constant 0 : i32
    return %c0_i32, %c0_i32_0 : i32, i32
  }
  func.func @transform_6(%arg0: i32) -> (i32, i32) {
    %c0_i32 = arith.constant 0 : i32
    %c0_i32_0 = arith.constant 0 : i32
    %c0_i32_1 = arith.constant 0 : i32
    return %c0_i32, %c0_i32_0 : i32, i32
  }
  func.func @transform_7(%arg0: i32) -> (i32, i32) {
    %c0_i32 = arith.constant 0 : i32
    %c0_i32_0 = arith.constant 0 : i32
    %c0_i32_1 = arith.constant 0 : i32
    return %c0_i32, %c0_i32_0 : i32, i32
  }
  func.func @transform_8(%arg0: i32) -> (i32, i32) {
    %c0_i32 = arith.constant 0 : i32
    %c0_i32_0 = arith.constant 0 : i32
    %c0_i32_1 = arith.constant 0 : i32
    return %c0_i32, %c0_i32_0 : i32, i32
  }
  func.func @transform_9(%arg0: i32) -> (i32, i32) {
    %c0_i32 = arith.constant 0 : i32
    %c0_i32_0 = arith.constant 0 : i32
    %c0_i32_1 = arith.constant 0 : i32
    return %c0_i32, %c0_i32_0 : i32, i32
  }
  func.func @transform_10(%arg0: i32) -> (i32, i32) {
    %c0_i32 = arith.constant 0 : i32
    %c0_i32_0 = arith.constant 0 : i32
    %c0_i32_1 = arith.constant 0 : i32
    return %c0_i32, %c0_i32_0 : i32, i32
  }
  func.func @transform_11(%arg0: i32) -> (i32, i32) {
    %c0_i32 = arith.constant 0 : i32
    %c0_i32_0 = arith.constant 0 : i32
    %c0_i32_1 = arith.constant 0 : i32
    return %c0_i32, %c0_i32_0 : i32, i32
  }
  func.func @transform_12(%arg0: i32) -> (i32, i32) {
    %c0_i32 = arith.constant 0 : i32
    %c0_i32_0 = arith.constant 0 : i32
    %c0_i32_1 = arith.constant 0 : i32
    return %c0_i32, %c0_i32_0 : i32, i32
  }
  func.func @transform_13(%arg0: i32) -> (i32, i32) {
    %c0_i32 = arith.constant 0 : i32
    %c0_i32_0 = arith.constant 0 : i32
    return %arg0, %c0_i32 : i32, i32
  }
}

</mosaic_0001>

<llo_original>
// kernel: tpu_custom_call.1
$region0: #{tpu_custom_call.1}
  #allocation0 [shape = 'u32[]', space=smem, size = 0x4, offset = 0x4, fixed_abs, tag = 'smem constant byte address 0x4 - core index']
  #allocation1 [shape = 'u32[144,128]{1,0:T(1,128)}', space=vmem, size = 0x12000, scoped, tag = 'internal scratch']
  %s0 = inlined_call_operand.hbm [shape: f32[16,128], index: 0, kind: input, shape index: {}]
  %s1 = inlined_call_operand.hbm [shape: f32[128,128], index: 1, kind: input, shape index: {}]
  %s2 = inlined_call_operand.vmem [shape: f32[1,128], index: 2, kind: input, shape index: {}]
  %s3 = inlined_call_operand.vmem [shape: f32[1,128], index: 3, kind: input, shape index: {}]
  %s4 = inlined_call_operand.vmem [shape: f32[1,128], index: 4, kind: input, shape index: {}]
  %s5 = inlined_call_operand.hbm [shape: f32[128,128], index: 5, kind: input, shape index: {}]
  %s6 = inlined_call_operand.vmem [shape: f32[1,128], index: 6, kind: input, shape index: {}]
  %s7 = inlined_call_operand.vmem [shape: f32[1,128], index: 7, kind: input, shape index: {}]
  %s8 = inlined_call_operand.vmem [shape: f32[1,128], index: 8, kind: input, shape index: {}]
  %s9 = inlined_call_operand.hbm [shape: f32[128,128], index: 9, kind: input, shape index: {}]
  %s10 = inlined_call_operand.vmem [shape: f32[1,128], index: 10, kind: input, shape index: {}]
  %s11 = inlined_call_operand.vmem [shape: f32[1,128], index: 11, kind: input, shape index: {}]
  %s12 = inlined_call_operand.vmem [shape: f32[1,128], index: 12, kind: input, shape index: {}]
  %s13 = inlined_call_operand.hbm [shape: f32[16,128], index: 13, kind: output, shape index: {}]
  %s14 = sld [smem:[#allocation0]]
  $region78: #{tpu_custom_call.1} parent=0
    _
  %s16 = ssub.s32 1, %s14
  %s17 = scalar_select 0, %s16, %s14
  $region1: #{tpu_custom_call.1} parent=0
    #allocation2 [shape = 'u8[8192]{0}', space=vmem, size = 0x2000, scoped, tag = 'input window, operand 0, single buffered']
    #allocation3 [shape = 's32[1]{0}', space=sflag, size = 0x4, scoped, tag = 'scoped memory for tpu_custom_call.1']
    #allocation4 [shape = 's32[1]{0}', space=sflag, size = 0x4, scoped, tag = 'scoped memory for tpu_custom_call.1']
    #allocation5 [shape = 'u8[65536]{0}', space=vmem, size = 0x10000, scoped, tag = 'input window, operand 1, single buffered']
    #allocation6 [shape = 's32[1]{0}', space=sflag, size = 0x4, scoped, tag = 'scoped memory for tpu_custom_call.1']
    #allocation7 [shape = 'u8[65536]{0}', space=vmem, size = 0x10000, scoped, tag = 'input window, operand 5, single buffered']
    #allocation8 [shape = 'u8[65536]{0}', space=vmem, size = 0x10000, scoped, tag = 'input window, operand 9, single buffered']
    #allocation9 [shape = 's32[1]{0}', space=sflag, size = 0x4, scoped, tag = 'scoped memory for tpu_custom_call.1']
    #allocation10 [shape = 'u8[8192]{0}', space=vmem, size = 0x2000, scoped, tag = 'output window, operand 0, single buffered']
    %18 = vsyncpa [#allocation3], 0
    %19 = vsyncpa [#allocation6], 0
    %20 = vsyncpa [#allocation9], 0
    %21 = vsyncpa [#allocation4], 0
    // Predicated region
    $region2: #{tpu_custom_call.1} parent=1 // pred_check
      _
    $region3: #{tpu_custom_call.1} parent=1 // pred_check_branch
      %23 = sbr.rel (0) target = $region5
    $region4: #{tpu_custom_call.1} parent=1 // pred_region
      %s25 = ssub.s32 256, 256
      %26 = vsyncadd [#allocation3], %s25
      %s27 = sshll.u32 [#allocation2], 4
      %s28 = int_to_ptr.vmem [resolvable:$true] %s27
      %33 = dma.hbm_to_vmem [thread:$0]  %s0, 256, %s28, [#allocation3], 128, 128, 8
    $region5: #{tpu_custom_call.1} parent=1 // pred_fallthru
      _
    // Predicated region
    $region6: #{tpu_custom_call.1} parent=1 // pred_check
      _
    $region7: #{tpu_custom_call.1} parent=1 // pred_check_branch
      %35 = sbr.rel (0) target = $region9
    $region8: #{tpu_custom_call.1} parent=1 // pred_region
      %s37 = ssub.s32 2048, 2048
      %38 = vsyncadd [#allocation6], %s37
      %s39 = sshll.u32 [#allocation5], 4
      %s40 = int_to_ptr.vmem [resolvable:$true] %s39
      %45 = dma.hbm_to_vmem [thread:$0]  %s1, 2048, %s40, [#allocation6], 128, 128, 8
    $region9: #{tpu_custom_call.1} parent=1 // pred_fallthru
      _
    // Predicated region
    $region10: #{tpu_custom_call.1} parent=1 // pred_check
      _
    $region11: #{tpu_custom_call.1} parent=1 // pred_check_branch
      %47 = sbr.rel (0) target = $region13
    $region12: #{tpu_custom_call.1} parent=1 // pred_region
      _
    $region13: #{tpu_custom_call.1} parent=1 // pred_fallthru
      _
    // Predicated region
    $region14: #{tpu_custom_call.1} parent=1 // pred_check
      _
    $region15: #{tpu_custom_call.1} parent=1 // pred_check_branch
      %49 = sbr.rel (0) target = $region17
    $region16: #{tpu_custom_call.1} parent=1 // pred_region
      _
    $region17: #{tpu_custom_call.1} parent=1 // pred_fallthru
      _
    // Predicated region
    $region18: #{tpu_custom_call.1} parent=1 // pred_check
      _
    $region19: #{tpu_custom_call.1} parent=1 // pred_check_branch
      %51 = sbr.rel (0) target = $region21
    $region20: #{tpu_custom_call.1} parent=1 // pred_region
      _
    $region21: #{tpu_custom_call.1} parent=1 // pred_fallthru
      _
    // Predicated region
    $region22: #{tpu_custom_call.1} parent=1 // pred_check
      _
    $region23: #{tpu_custom_call.1} parent=1 // pred_check_branch
      %53 = sbr.rel (0) target = $region25
    $region24: #{tpu_custom_call.1} parent=1 // pred_region
      %s55 = ssub.s32 2048, 2048
      %56 = vsyncadd [#allocation6], %s55
      %s57 = sshll.u32 [#allocation7], 4
      %s58 = int_to_ptr.vmem [resolvable:$true] %s57
      %63 = dma.hbm_to_vmem [thread:$0]  %s5, 2048, %s58, [#allocation6], 128, 128, 8
    $region25: #{tpu_custom_call.1} parent=1 // pred_fallthru
      _
    // Predicated region
    $region26: #{tpu_custom_call.1} parent=1 // pred_check
      _
    $region27: #{tpu_custom_call.1} parent=1 // pred_check_branch
      %65 = sbr.rel (0) target = $region29
    $region28: #{tpu_custom_call.1} parent=1 // pred_region
      _
    $region29: #{tpu_custom_call.1} parent=1 // pred_fallthru
      _
    // Predicated region
    $region30: #{tpu_custom_call.1} parent=1 // pred_check
      _
    $region31: #{tpu_custom_call.1} parent=1 // pred_check_branch
      %67 = sbr.rel (0) target = $region33
    $region32: #{tpu_custom_call.1} parent=1 // pred_region
      _
    $region33: #{tpu_custom_call.1} parent=1 // pred_fallthru
      _
    // Predicated region
    $region34: #{tpu_custom_call.1} parent=1 // pred_check
      _
    $region35: #{tpu_custom_call.1} parent=1 // pred_check_branch
      %69 = sbr.rel (0) target = $region37
    $region36: #{tpu_custom_call.1} parent=1 // pred_region
      _
    $region37: #{tpu_custom_call.1} parent=1 // pred_fallthru
      _
    // Predicated region
    $region38: #{tpu_custom_call.1} parent=1 // pred_check
      _
    $region39: #{tpu_custom_call.1} parent=1 // pred_check_branch
      %71 = sbr.rel (0) target = $region41
    $region40: #{tpu_custom_call.1} parent=1 // pred_region
      %s73 = ssub.s32 2048, 2048
      %74 = vsyncadd [#allocation9], %s73
      %s75 = sshll.u32 [#allocation8], 4
      %s76 = int_to_ptr.vmem [resolvable:$true] %s75
      %81 = dma.hbm_to_vmem [thread:$0]  %s9, 2048, %s76, [#allocation9], 128, 128, 8
    $region41: #{tpu_custom_call.1} parent=1 // pred_fallthru
      _
    // Predicated region
    $region42: #{tpu_custom_call.1} parent=1 // pred_check
      _
    $region43: #{tpu_custom_call.1} parent=1 // pred_check_branch
      %83 = sbr.rel (0) target = $region45
    $region44: #{tpu_custom_call.1} parent=1 // pred_region
      _
    $region45: #{tpu_custom_call.1} parent=1 // pred_fallthru
      _
    // Predicated region
    $region46: #{tpu_custom_call.1} parent=1 // pred_check
      _
    $region47: #{tpu_custom_call.1} parent=1 // pred_check_branch
      %85 = sbr.rel (0) target = $region49
    $region48: #{tpu_custom_call.1} parent=1 // pred_region
      _
    $region49: #{tpu_custom_call.1} parent=1 // pred_fallthru
      _
    // Predicated region
    $region50: #{tpu_custom_call.1} parent=1 // pred_check
      _
    $region51: #{tpu_custom_call.1} parent=1 // pred_check_branch
      %87 = sbr.rel (0) target = $region53
    $region52: #{tpu_custom_call.1} parent=1 // pred_region
      _
    $region53: #{tpu_custom_call.1} parent=1 // pred_fallthru
      _
    // Predicated region
    $region54: #{tpu_custom_call.1} parent=1 // pred_check
      _
    $region55: #{tpu_custom_call.1} parent=1 // pred_check_branch
      %89 = sbr.rel (0) target = $region57
    $region56: #{tpu_custom_call.1} parent=1 // pred_region
      %90 = dma.done [#allocation3], 256
    $region57: #{tpu_custom_call.1} parent=1 // pred_fallthru
      _
    // Predicated region
    $region58: #{tpu_custom_call.1} parent=1 // pred_check
      _
    $region59: #{tpu_custom_call.1} parent=1 // pred_check_branch
      %92 = sbr.rel (0) target = $region61
    $region60: #{tpu_custom_call.1} parent=1 // pred_region
      %93 = dma.done [#allocation6], 2048
    $region61: #{tpu_custom_call.1} parent=1 // pred_fallthru
      _
    // Predicated region
    $region62: #{tpu_custom_call.1} parent=1 // pred_check
      _
    $region63: #{tpu_custom_call.1} parent=1 // pred_check_branch
      %95 = sbr.rel (0) target = $region65
    $region64: #{tpu_custom_call.1} parent=1 // pred_region
      %96 = dma.done [#allocation6], 2048
    $region65: #{tpu_custom_call.1} parent=1 // pred_fallthru
      _
    // Predicated region
    $region66: #{tpu_custom_call.1} parent=1 // pred_check
      _
    $region67: #{tpu_custom_call.1} parent=1 // pred_check_branch
      %98 = sbr.rel (0) target = $region69
    $region68: #{tpu_custom_call.1} parent=1 // pred_region
      %99 = dma.done [#allocation9], 2048
    $region69: #{tpu_custom_call.1} parent=1 // pred_fallthru
      _
    %v100 = vld [vmem:[#allocation2] sm:$0xff]
    %v101 = vld [vmem:[#allocation2 + $0x8] sm:$0xff]
    %v102 = vld [vmem:[#allocation5] sm:$0xff]
    %v103 = vld [vmem:[#allocation5 + $0x8] sm:$0xff]
    %v104 = vld [vmem:[#allocation5 + $0x10] sm:$0xff]
    %v105 = vld [vmem:[#allocation5 + $0x18] sm:$0xff]
    %v106 = vld [vmem:[#allocation5 + $0x20] sm:$0xff]
    %v107 = vld [vmem:[#allocation5 + $0x28] sm:$0xff]
    %v108 = vld [vmem:[#allocation5 + $0x30] sm:$0xff]
    %v109 = vld [vmem:[#allocation5 + $0x38] sm:$0xff]
    %v110 = vld [vmem:[#allocation5 + $0x40] sm:$0xff]
    %v111 = vld [vmem:[#allocation5 + $0x48] sm:$0xff]
    %v112 = vld [vmem:[#allocation5 + $0x50] sm:$0xff]
    %v113 = vld [vmem:[#allocation5 + $0x58] sm:$0xff]
    %v114 = vld [vmem:[#allocation5 + $0x60] sm:$0xff]
    %v115 = vld [vmem:[#allocation5 + $0x68] sm:$0xff]
    %v116 = vld [vmem:[#allocation5 + $0x70] sm:$0xff]
    %v117 = vld [vmem:[#allocation5 + $0x78] sm:$0xff]
    %v118 = vld [vmem:[%s2] sm:$0x1]
    %v120 = vlaneseq
    %v121 = vshrl.u32 %v120, 7
    %v122 = vsub.s32 0, %v121
    %v123 = vrot.slane %v118, %v122
    %125 = vmatprep.subr.mxu0 0.0
    %126 = vmatpush1.msra.mxu0 %v117
    %127 = vmatprep.subr.mxu0 0.0
    %128 = vmatpush1.msra.mxu0 %v116
    %129 = vmatprep.subr.mxu0 0.0
    %130 = vmatpush1.msra.mxu0 %v115
    %131 = vmatprep.subr.mxu0 0.0
    %132 = vmatpush1.msra.mxu0 %v114
    %133 = vmatprep.subr.mxu0 0.0
    %134 = vmatpush1.msra.mxu0 %v113
    %135 = vmatprep.subr.mxu0 0.0
    %136 = vmatpush1.msra.mxu0 %v112
    %137 = vmatprep.subr.mxu0 0.0
    %138 = vmatpush1.msra.mxu0 %v111
    %139 = vmatprep.subr.mxu0 0.0
    %140 = vmatpush1.msra.mxu0 %v110
    %141 = vmatprep.subr.mxu0 0.0
    %142 = vmatpush1.msra.mxu0 %v109
    %143 = vmatprep.subr.mxu0 0.0
    %144 = vmatpush1.msra.mxu0 %v108
    %145 = vmatprep.subr.mxu0 0.0
    %146 = vmatpush1.msra.mxu0 %v107
    %147 = vmatprep.subr.mxu0 0.0
    %148 = vmatpush1.msra.mxu0 %v106
    %149 = vmatprep.subr.mxu0 0.0
    %150 = vmatpush1.msra.mxu0 %v105
    %151 = vmatprep.subr.mxu0 0.0
    %152 = vmatpush1.msra.mxu0 %v104
    %153 = vmatprep.subr.mxu0 0.0
    %154 = vmatpush1.msra.mxu0 %v103
    %155 = vmatprep.subr.mxu0 0.0
    %156 = vmatpush1.msra.mxu0 %v102
    %157 = vmatprep.subr.mxu0 0.0
    %158 = vmatpush2.msra.mxu0 0.0
    %159 = vmatprep.subr.mxu0 0.0
    %160 = vmatpush2.msra.mxu0 0.0
    %161 = vmatprep.subr.mxu0 0.0
    %162 = vmatpush2.msra.mxu0 0.0
    %163 = vmatprep.subr.mxu0 0.0
    %164 = vmatpush2.msra.mxu0 0.0
    %165 = vmatprep.subr.mxu0 0.0
    %166 = vmatpush2.msra.mxu0 0.0
    %167 = vmatprep.subr.mxu0 0.0
    %168 = vmatpush2.msra.mxu0 0.0
    %169 = vmatprep.subr.mxu0 0.0
    %170 = vmatpush2.msra.mxu0 0.0
    %171 = vmatprep.subr.mxu0 0.0
    %172 = vmatpush2.msra.mxu0 0.0
    %173 = vmatprep.subr.mxu0 0.0
    %174 = vmatpush2.msra.mxu0 0.0
    %175 = vmatprep.subr.mxu0 0.0
    %176 = vmatpush2.msra.mxu0 0.0
    %177 = vmatprep.subr.mxu0 0.0
    %178 = vmatpush2.msra.mxu0 0.0
    %179 = vmatprep.subr.mxu0 0.0
    %180 = vmatpush2.msra.mxu0 0.0
    %181 = vmatprep.subr.mxu0 0.0
    %182 = vmatpush2.msra.mxu0 0.0
    %183 = vmatprep.subr.mxu0 0.0
    %184 = vmatpush2.msra.mxu0 0.0
    %185 = vmatprep.subr.mxu0 0.0
    %186 = vmatpush2.msra.mxu0 0.0
    %187 = vmatprep.subr.mxu0 0.0
    %188 = vmatpush2.msra.mxu0 0.0
    %189 = vmatprep.mubr.f32.mxu0 0.0
    %190 = vmatmul.mubr.f32.gmra.mxu0 %v100
    %v191 = vpop.f32.mrf.mxu0
    %v192 = vadd.f32 %v123, %v191
    %v193 = vpop.f32.mrf.mxu0
    %194 = vmatprep.mubr.f32.mxu0 0.0
    %195 = vmatmul.mubr.f32.gmra.mxu0 %v101
    %v196 = vpop.f32.mrf.mxu0
    %v197 = vadd.f32 %v123, %v196
    %v198 = vpop.f32.mrf.mxu0
    %199 = vdwg.mxu0
    %v200 = vmax.f32 %v192, 0.0
    %v201 = vmax.f32 %v197, 0.0
    %202 = vadd.xlane.f32.xlu0 %v200
    %v203 = vpop.xlane.xlu0 %202
    %204 = vadd.xlane.f32.xlu0 %v201
    %v205 = vpop.xlane.xlu0 %204
    %v206 = vmul.f32 %v200, %v200
    %v207 = vmul.f32 %v201, %v201
    %208 = vadd.xlane.f32.xlu0 %v206
    %v209 = vpop.xlane.xlu0 %208
    %210 = vadd.xlane.f32.xlu0 %v207
    %v211 = vpop.xlane.xlu0 %210
    %v212 = vmul.f32 %v203, 0.03125
    %v213 = vmul.f32 %v205, 0.03125
    %v214 = vmul.f32 %v209, 0.03125
    %v215 = vmul.f32 %v211, 0.03125
    %v216 = vmul.f32 %v212, %v212
    %v217 = vmul.f32 %v213, %v213
    %v218 = vsub.f32 %v214, %v216
    %v219 = vsub.f32 %v215, %v217
    %v220 = vmax.f32 %v218, 0.0
    %v221 = vmax.f32 %v219, 0.0
    %v222 = vadd.f32 %v220, 1e-05
    %v223 = vadd.f32 %v221, 1e-05
    %v224 = vrsqrt.pop %v222
    %v225 = vrsqrt.pop %v223
    %v226 = vsub.f32 %v200, %v212
    %v227 = vsub.f32 %v201, %v213
    %v228 = vmul.f32 %v226, %v224
    %v229 = vmul.f32 %v227, %v225
    %v230 = vld [vmem:[%s3] sm:$0x1]
    %v232 = vlaneseq
    %v233 = vshrl.u32 %v232, 7
    %v234 = vsub.s32 0, %v233
    %v235 = vrot.slane %v230, %v234
    %v237 = vmul.f32 %v228, %v235
    %v238 = vmul.f32 %v229, %v235
    %v239 = vld [vmem:[%s4] sm:$0x1]
    %v241 = vlaneseq
    %v242 = vshrl.u32 %v241, 7
    %v243 = vsub.s32 0, %v242
    %v244 = vrot.slane %v239, %v243
    %v246 = vadd.f32 %v237, %v244
    %v247 = vadd.f32 %v238, %v244
    %v248 = vld [vmem:[#allocation7] sm:$0xff]
    %v249 = vld [vmem:[#allocation7 + $0x8] sm:$0xff]
    %v250 = vld [vmem:[#allocation7 + $0x10] sm:$0xff]
    %v251 = vld [vmem:[#allocation7 + $0x18] sm:$0xff]
    %v252 = vld [vmem:[#allocation7 + $0x20] sm:$0xff]
    %v253 = vld [vmem:[#allocation7 + $0x28] sm:$0xff]
    %v254 = vld [vmem:[#allocation7 + $0x30] sm:$0xff]
    %v255 = vld [vmem:[#allocation7 + $0x38] sm:$0xff]
    %v256 = vld [vmem:[#allocation7 + $0x40] sm:$0xff]
    %v257 = vld [vmem:[#allocation7 + $0x48] sm:$0xff]
    %v258 = vld [vmem:[#allocation7 + $0x50] sm:$0xff]
    %v259 = vld [vmem:[#allocation7 + $0x58] sm:$0xff]
    %v260 = vld [vmem:[#allocation7 + $0x60] sm:$0xff]
    %v261 = vld [vmem:[#allocation7 + $0x68] sm:$0xff]
    %v262 = vld [vmem:[#allocation7 + $0x70] sm:$0xff]
    %v263 = vld [vmem:[#allocation7 + $0x78] sm:$0xff]
    %v264 = vld [vmem:[%s6] sm:$0x1]
    %v266 = vlaneseq
    %v267 = vshrl.u32 %v266, 7
    %v268 = vsub.s32 0, %v267
    %v269 = vrot.slane %v264, %v268
    %271 = vmatprep.subr.mxu0 0.0
    %272 = vmatpush1.msra.mxu0 %v263
    %273 = vmatprep.subr.mxu0 0.0
    %274 = vmatpush1.msra.mxu0 %v262
    %275 = vmatprep.subr.mxu0 0.0
    %276 = vmatpush1.msra.mxu0 %v261
    %277 = vmatprep.subr.mxu0 0.0
    %278 = vmatpush1.msra.mxu0 %v260
    %279 = vmatprep.subr.mxu0 0.0
    %280 = vmatpush1.msra.mxu0 %v259
    %281 = vmatprep.subr.mxu0 0.0
    %282 = vmatpush1.msra.mxu0 %v258
    %283 = vmatprep.subr.mxu0 0.0
    %284 = vmatpush1.msra.mxu0 %v257
    %285 = vmatprep.subr.mxu0 0.0
    %286 = vmatpush1.msra.mxu0 %v256
    %287 = vmatprep.subr.mxu0 0.0
    %288 = vmatpush1.msra.mxu0 %v255
    %289 = vmatprep.subr.mxu0 0.0
    %290 = vmatpush1.msra.mxu0 %v254
    %291 = vmatprep.subr.mxu0 0.0
    %292 = vmatpush1.msra.mxu0 %v253
    %293 = vmatprep.subr.mxu0 0.0
    %294 = vmatpush1.msra.mxu0 %v252
    %295 = vmatprep.subr.mxu0 0.0
    %296 = vmatpush1.msra.mxu0 %v251
    %297 = vmatprep.subr.mxu0 0.0
    %298 = vmatpush1.msra.mxu0 %v250
    %299 = vmatprep.subr.mxu0 0.0
    %300 = vmatpush1.msra.mxu0 %v249
    %301 = vmatprep.subr.mxu0 0.0
    %302 = vmatpush1.msra.mxu0 %v248
    %303 = vmatprep.subr.mxu0 0.0
    %304 = vmatpush2.msra.mxu0 0.0
    %305 = vmatprep.subr.mxu0 0.0
    %306 = vmatpush2.msra.mxu0 0.0
    %307 = vmatprep.subr.mxu0 0.0
    %308 = vmatpush2.msra.mxu0 0.0
    %309 = vmatprep.subr.mxu0 0.0
    %310 = vmatpush2.msra.mxu0 0.0
    %311 = vmatprep.subr.mxu0 0.0
    %312 = vmatpush2.msra.mxu0 0.0
    %313 = vmatprep.subr.mxu0 0.0
    %314 = vmatpush2.msra.mxu0 0.0
    %315 = vmatprep.subr.mxu0 0.0
    %316 = vmatpush2.msra.mxu0 0.0
    %317 = vmatprep.subr.mxu0 0.0
    %318 = vmatpush2.msra.mxu0 0.0
    %319 = vmatprep.subr.mxu0 0.0
    %320 = vmatpush2.msra.mxu0 0.0
    %321 = vmatprep.subr.mxu0 0.0
    %322 = vmatpush2.msra.mxu0 0.0
    %323 = vmatprep.subr.mxu0 0.0
    %324 = vmatpush2.msra.mxu0 0.0
    %325 = vmatprep.subr.mxu0 0.0
    %326 = vmatpush2.msra.mxu0 0.0
    %327 = vmatprep.subr.mxu0 0.0
    %328 = vmatpush2.msra.mxu0 0.0
    %329 = vmatprep.subr.mxu0 0.0
    %330 = vmatpush2.msra.mxu0 0.0
    %331 = vmatprep.subr.mxu0 0.0
    %332 = vmatpush2.msra.mxu0 0.0
    %333 = vmatprep.subr.mxu0 0.0
    %334 = vmatpush2.msra.mxu0 0.0
    %335 = vmatprep.mubr.f32.mxu0 0.0
    %336 = vmatmul.mubr.f32.gmra.mxu0 %v246
    %v337 = vpop.f32.mrf.mxu0
    %v338 = vadd.f32 %v269, %v337
    %v339 = vpop.f32.mrf.mxu0
    %340 = vmatprep.mubr.f32.mxu0 0.0
    %341 = vmatmul.mubr.f32.gmra.mxu0 %v247
    %v342 = vpop.f32.mrf.mxu0
    %v343 = vadd.f32 %v269, %v342
    %v344 = vpop.f32.mrf.mxu0
    %345 = vdwg.mxu0
    %v346 = vmax.f32 %v338, 0.0
    %v347 = vmax.f32 %v343, 0.0
    %348 = vadd.xlane.f32.xlu0 %v346
    %v349 = vpop.xlane.xlu0 %348
    %350 = vadd.xlane.f32.xlu0 %v347
    %v351 = vpop.xlane.xlu0 %350
    %v352 = vmul.f32 %v346, %v346
    %v353 = vmul.f32 %v347, %v347
    %354 = vadd.xlane.f32.xlu0 %v352
    %v355 = vpop.xlane.xlu0 %354
    %356 = vadd.xlane.f32.xlu0 %v353
    %v357 = vpop.xlane.xlu0 %356
    %v358 = vmul.f32 %v349, 0.03125
    %v359 = vmul.f32 %v351, 0.03125
    %v360 = vmul.f32 %v355, 0.03125
    %v361 = vmul.f32 %v357, 0.03125
    %v362 = vmul.f32 %v358, %v358
    %v363 = vmul.f32 %v359, %v359
    %v364 = vsub.f32 %v360, %v362
    %v365 = vsub.f32 %v361, %v363
    %v366 = vmax.f32 %v364, 0.0
    %v367 = vmax.f32 %v365, 0.0
    %v368 = vadd.f32 %v366, 1e-05
    %v369 = vadd.f32 %v367, 1e-05
    %v370 = vrsqrt.pop %v368
    %v371 = vrsqrt.pop %v369
    %v372 = vsub.f32 %v346, %v358
    %v373 = vsub.f32 %v347, %v359
    %v374 = vmul.f32 %v372, %v370
    %v375 = vmul.f32 %v373, %v371
    %v376 = vld [vmem:[%s7] sm:$0x1]
    %v378 = vlaneseq
    %v379 = vshrl.u32 %v378, 7
    %v380 = vsub.s32 0, %v379
    %v381 = vrot.slane %v376, %v380
    %v383 = vmul.f32 %v374, %v381
    %v384 = vmul.f32 %v375, %v381
    %v385 = vld [vmem:[%s8] sm:$0x1]
    %v387 = vlaneseq
    %v388 = vshrl.u32 %v387, 7
    %v389 = vsub.s32 0, %v388
    %v390 = vrot.slane %v385, %v389
    %v392 = vadd.f32 %v383, %v390
    %v393 = vadd.f32 %v384, %v390
    %v394 = vld [vmem:[#allocation8] sm:$0xff]
    %v395 = vld [vmem:[#allocation8 + $0x8] sm:$0xff]
    %v396 = vld [vmem:[#allocation8 + $0x10] sm:$0xff]
    %v397 = vld [vmem:[#allocation8 + $0x18] sm:$0xff]
    %v398 = vld [vmem:[#allocation8 + $0x20] sm:$0xff]
    %v399 = vld [vmem:[#allocation8 + $0x28] sm:$0xff]
    %v400 = vld [vmem:[#allocation8 + $0x30] sm:$0xff]
    %v401 = vld [vmem:[#allocation8 + $0x38] sm:$0xff]
    %v402 = vld [vmem:[#allocation8 + $0x40] sm:$0xff]
    %v403 = vld [vmem:[#allocation8 + $0x48] sm:$0xff]
    %v404 = vld [vmem:[#allocation8 + $0x50] sm:$0xff]
    %v405 = vld [vmem:[#allocation8 + $0x58] sm:$0xff]
    %v406 = vld [vmem:[#allocation8 + $0x60] sm:$0xff]
    %v407 = vld [vmem:[#allocation8 + $0x68] sm:$0xff]
    %v408 = vld [vmem:[#allocation8 + $0x70] sm:$0xff]
    %v409 = vld [vmem:[#allocation8 + $0x78] sm:$0xff]
    %v410 = vld [vmem:[%s10] sm:$0x1]
    %v412 = vlaneseq
    %v413 = vshrl.u32 %v412, 7
    %v414 = vsub.s32 0, %v413
    %v415 = vrot.slane %v410, %v414
    %417 = vmatprep.subr.mxu0 0.0
    %418 = vmatpush1.msra.mxu0 %v409
    %419 = vmatprep.subr.mxu0 0.0
    %420 = vmatpush1.msra.mxu0 %v408
    %421 = vmatprep.subr.mxu0 0.0
    %422 = vmatpush1.msra.mxu0 %v407
    %423 = vmatprep.subr.mxu0 0.0
    %424 = vmatpush1.msra.mxu0 %v406
    %425 = vmatprep.subr.mxu0 0.0
    %426 = vmatpush1.msra.mxu0 %v405
    %427 = vmatprep.subr.mxu0 0.0
    %428 = vmatpush1.msra.mxu0 %v404
    %429 = vmatprep.subr.mxu0 0.0
    %430 = vmatpush1.msra.mxu0 %v403
    %431 = vmatprep.subr.mxu0 0.0
    %432 = vmatpush1.msra.mxu0 %v402
    %433 = vmatprep.subr.mxu0 0.0
    %434 = vmatpush1.msra.mxu0 %v401
    %435 = vmatprep.subr.mxu0 0.0
    %436 = vmatpush1.msra.mxu0 %v400
    %437 = vmatprep.subr.mxu0 0.0
    %438 = vmatpush1.msra.mxu0 %v399
    %439 = vmatprep.subr.mxu0 0.0
    %440 = vmatpush1.msra.mxu0 %v398
    %441 = vmatprep.subr.mxu0 0.0
    %442 = vmatpush1.msra.mxu0 %v397
    %443 = vmatprep.subr.mxu0 0.0
    %444 = vmatpush1.msra.mxu0 %v396
    %445 = vmatprep.subr.mxu0 0.0
    %446 = vmatpush1.msra.mxu0 %v395
    %447 = vmatprep.subr.mxu0 0.0
    %448 = vmatpush1.msra.mxu0 %v394
    %449 = vmatprep.subr.mxu0 0.0
    %450 = vmatpush2.msra.mxu0 0.0
    %451 = vmatprep.subr.mxu0 0.0
    %452 = vmatpush2.msra.mxu0 0.0
    %453 = vmatprep.subr.mxu0 0.0
    %454 = vmatpush2.msra.mxu0 0.0
    %455 = vmatprep.subr.mxu0 0.0
    %456 = vmatpush2.msra.mxu0 0.0
    %457 = vmatprep.subr.mxu0 0.0
    %458 = vmatpush2.msra.mxu0 0.0
    %459 = vmatprep.subr.mxu0 0.0
    %460 = vmatpush2.msra.mxu0 0.0
    %461 = vmatprep.subr.mxu0 0.0
    %462 = vmatpush2.msra.mxu0 0.0
    %463 = vmatprep.subr.mxu0 0.0
    %464 = vmatpush2.msra.mxu0 0.0
    %465 = vmatprep.subr.mxu0 0.0
    %466 = vmatpush2.msra.mxu0 0.0
    %467 = vmatprep.subr.mxu0 0.0
    %468 = vmatpush2.msra.mxu0 0.0
    %469 = vmatprep.subr.mxu0 0.0
    %470 = vmatpush2.msra.mxu0 0.0
    %471 = vmatprep.subr.mxu0 0.0
    %472 = vmatpush2.msra.mxu0 0.0
    %473 = vmatprep.subr.mxu0 0.0
    %474 = vmatpush2.msra.mxu0 0.0
    %475 = vmatprep.subr.mxu0 0.0
    %476 = vmatpush2.msra.mxu0 0.0
    %477 = vmatprep.subr.mxu0 0.0
    %478 = vmatpush2.msra.mxu0 0.0
    %479 = vmatprep.subr.mxu0 0.0
    %480 = vmatpush2.msra.mxu0 0.0
    %481 = vmatprep.mubr.f32.mxu0 0.0
    %482 = vmatmul.mubr.f32.gmra.mxu0 %v392
    %v483 = vpop.f32.mrf.mxu0
    %v484 = vadd.f32 %v415, %v483
    %v485 = vpop.f32.mrf.mxu0
    %486 = vmatprep.mubr.f32.mxu0 0.0
    %487 = vmatmul.mubr.f32.gmra.mxu0 %v393
    %v488 = vpop.f32.mrf.mxu0
    %v489 = vadd.f32 %v415, %v488
    %v490 = vpop.f32.mrf.mxu0
    %491 = vdwg.mxu0
    %v492 = vmax.f32 %v484, 0.0
    %v493 = vmax.f32 %v489, 0.0
    %494 = vadd.xlane.f32.xlu0 %v492
    %v495 = vpop.xlane.xlu0 %494
    %496 = vadd.xlane.f32.xlu0 %v493
    %v497 = vpop.xlane.xlu0 %496
    %v498 = vmul.f32 %v492, %v492
    %v499 = vmul.f32 %v493, %v493
    %500 = vadd.xlane.f32.xlu0 %v498
    %v501 = vpop.xlane.xlu0 %500
    %502 = vadd.xlane.f32.xlu0 %v499
    %v503 = vpop.xlane.xlu0 %502
    %v504 = vmul.f32 %v495, 0.0625
    %v505 = vmul.f32 %v497, 0.0625
    %v506 = vmul.f32 %v501, 0.0625
    %v507 = vmul.f32 %v503, 0.0625
    %v508 = vmul.f32 %v504, %v504
    %v509 = vmul.f32 %v505, %v505
    %v510 = vsub.f32 %v506, %v508
    %v511 = vsub.f32 %v507, %v509
    %v512 = vmax.f32 %v510, 0.0
    %v513 = vmax.f32 %v511, 0.0
    %v514 = vadd.f32 %v512, 1e-05
    %v515 = vadd.f32 %v513, 1e-05
    %v516 = vrsqrt.pop %v514
    %v517 = vrsqrt.pop %v515
    %v518 = vsub.f32 %v492, %v504
    %v519 = vsub.f32 %v493, %v505
    %v520 = vmul.f32 %v518, %v516
    %v521 = vmul.f32 %v519, %v517
    %v522 = vld [vmem:[%s11] sm:$0x1]
    %v524 = vlaneseq
    %v525 = vshrl.u32 %v524, 7
    %v526 = vsub.s32 0, %v525
    %v527 = vrot.slane %v522, %v526
    %v529 = vmul.f32 %v520, %v527
    %v530 = vmul.f32 %v521, %v527
    %v531 = vld [vmem:[%s12] sm:$0x1]
    %v533 = vlaneseq
    %v534 = vshrl.u32 %v533, 7
    %v535 = vsub.s32 0, %v534
    %v536 = vrot.slane %v531, %v535
    %v538 = vadd.f32 %v529, %v536
    %v539 = vadd.f32 %v530, %v536
    %540 = vst [vmem:[#allocation10] sm:$0xff] %v538
    %541 = vst [vmem:[#allocation10 + $0x8] sm:$0xff] %v539
    // Predicated region
    $region70: #{tpu_custom_call.1} parent=1 // pred_check
      _
    $region71: #{tpu_custom_call.1} parent=1 // pred_check_branch
      %543 = sbr.rel (0) target = $region73
    $region72: #{tpu_custom_call.1} parent=1 // pred_region
      %s545 = ssub.s32 256, 256
      %546 = vsyncadd [#allocation4], %s545
      %s547 = sshll.u32 [#allocation10], 4
      %s548 = int_to_ptr.vmem [resolvable:$true] %s547
      %553 = dma.vmem_to_hbm [thread:$0]  %s548, 256, %s13, [#allocation4], 128, 128, 8
    $region73: #{tpu_custom_call.1} parent=1 // pred_fallthru
      _
    // Predicated region
    $region74: #{tpu_custom_call.1} parent=1 // pred_check
      _
    $region75: #{tpu_custom_call.1} parent=1 // pred_check_branch
      %555 = sbr.rel (0) target = $region77
    $region76: #{tpu_custom_call.1} parent=1 // pred_region
      %556 = dma.done [#allocation4], 256
    $region77: #{tpu_custom_call.1} parent=1 // pred_fallthru
      _
    %557 = vsyncpa [#allocation3], 1
    %558 = vsyncpa [#allocation6], 1
    %559 = vsyncpa [#allocation9], 1
    %560 = vsyncpa [#allocation4], 1

</llo_original>
